<compile_context>
chip_gen: v6e
topology: v6e:2x2x1
jax: 0.10.0
libtpu: 0.0.40
codegen_flags: <defaults>
</compile_context>

<pallas_src>
import math
import functools

import jax
import jax.numpy as jnp
import numpy as np
from jax.experimental import pallas as pl
from jax.experimental.pallas import tpu as pltpu

SAW_K = 8          # stands in for int(os.environ['SAW_K'])
# TODO(synk): the torch module reads SAW_METHOD / SAW_K from env vars at import
# time; here they are plain Python config and both methods are built & tested.

_MAX_TILE_LANES = 32768                 # spatial (lane) tile upper bound
_MAX_BATCH_TILE = 16                    # static unroll bound for small-S maps
_SINGLE_BUF_WEIGHT_BYTES = 2 * 1024 * 1024  # single-buffer weights above this


# ---------------------------------------------------------------------------
# Generation-aware configuration (block size, VMEM budget, fold threshold)
# ---------------------------------------------------------------------------
_HW_CFG = None


def _hw_config():
    global _HW_CFG
    if _HW_CFG is not None:
        return _HW_CFG
    kind = ""
    try:
        kind = jax.devices()[0].device_kind.lower()
    except Exception:
        pass
    vmem_phys = None
    try:
        vmem_phys = int(pltpu.get_tpu_info().vmem_capacity_bytes)
    except Exception:
        vmem_phys = None
    if vmem_phys is None:
        # Heuristic fallback: v7x-class has 64 MiB per TC, older gens 128 MiB.
        vmem_phys = (64 if "v7" in kind else 128) * 1024 * 1024
    is_v5e = ("v5e" in kind) or ("v5 lite" in kind) or ("v5lite" in kind)
    if vmem_phys <= 64 * 1024 * 1024:
        # v7x-class: ~3.2 TB/s HBM -> bigger blocks matter, but leave VMEM
        # headroom under the 64 MiB physical capacity.
        cfg = dict(vmem_limit_bytes=48 * 1024 * 1024,
                   target_block_bytes=4 * 1024 * 1024)
    else:
        # v5e / v6e: 128 MiB physical VMEM -> 8 MiB blocks, 64 MiB scoped limit.
        cfg = dict(vmem_limit_bytes=64 * 1024 * 1024,
                   target_block_bytes=8 * 1024 * 1024)
    # Dense roll/lrn fold costs ~2*C MXU FLOPs per element; v5e's 197 TF/s MXU
    # hits its roofline near C~512 (f32), v6e/v7x near C~1024.  Halved again
    # for bf16 activations in __call__ (2x HBM element rate).
    cfg["roll_fold_max_c"] = 512 if is_v5e else 1024
    cfg["is_v5e"] = is_v5e
    _HW_CFG = cfg
    return cfg


# ---------------------------------------------------------------------------
# One-time runtime probe: pltpu.roll direction vs jnp.roll / torch.roll
# (only run if the large-C shift path is actually selected).
# ---------------------------------------------------------------------------
_ROLL_MATCHES_JNP = None


def _pltpu_roll_matches_jnp_roll():
    global _ROLL_MATCHES_JNP
    if _ROLL_MATCHES_JNP is not None:
        return _ROLL_MATCHES_JNP

    def probe_kernel(x_ref, o_ref):
        o_ref[...] = pltpu.roll(x_ref[...], 1, axis=0)

    x = jnp.tile(jnp.arange(8, dtype=jnp.float32)[:, None], (1, 128))
    try:
        out = pl.pallas_call(
            probe_kernel,
            out_shape=jax.ShapeDtypeStruct((8, 128), jnp.float32))(x)
        # jnp.roll(x, 1, axis=0)[1, 0] == x[0, 0] == 0.0
        _ROLL_MATCHES_JNP = bool(np.asarray(out)[1, 0] == 0.0)
    except Exception:
        _ROLL_MATCHES_JNP = True
    return _ROLL_MATCHES_JNP


# ---------------------------------------------------------------------------
# Pallas kernels.  Data blocks are (NB, C, TS): batch slabs stacked on the
# leading dim, channels on sublanes, spatial on lanes.
# ---------------------------------------------------------------------------
def _roll_fold_kernel(x_ref, a_ref, o_ref, *, ew_dtype):
    """'roll': K channel rolls + thetas folded into A (C, C), bf16.
    One MXU matmul + a VPU epilogue per (C, TS) slab."""
    a = a_ref[...]
    for b in range(x_ref.shape[0]):                      # static unroll over NB
        blk = x_ref[b]                                   # native dtype, no f32 copy
        acc = jnp.dot(a, blk, preferred_element_type=jnp.float32)   # (C, TS) f32
        x = (1.0 + acc).astype(ew_dtype)
        o_ref[b] = (x * blk.astype(ew_dtype)).astype(o_ref.dtype)


def _roll_shift_kernel(x_ref, th_ref, o_ref, *, shifts):
    """'roll' fallback for C above the fold threshold: K sublane rolls (XLU)
    + theta FMAs (VPU).  Wrapper guarantees C % 8 == 0 so the sublane roll
    wraps at the true channel extent.  Math stays f32 (v5e-safe)."""
    th = th_ref[...]
    for b in range(x_ref.shape[0]):
        blk = x_ref[b].astype(jnp.float32)
        x = jnp.ones_like(blk)
        for i, sh in enumerate(shifts):                  # static unroll over K
            x = x + th[:, i:i + 1] * pltpu.roll(blk, sh, axis=0)
        o_ref[b] = (x * blk).astype(o_ref.dtype)


def _lrn_fold_kernel(x_ref, w_ref, o_ref, *, ew_dtype):
    """'lrn' with W = Q @ P folded in the wrapper (bf16, (C, C)): a single MXU
    matmul per slab; only the channel-L2 norm + divide epilogue stays on the
    VPU/XLU/EUP."""
    w = w_ref[...]
    for b in range(x_ref.shape[0]):
        blk = x_ref[b]
        x = jnp.dot(w, blk, preferred_element_type=jnp.float32)     # (C, TS) f32
        nrm = jnp.sqrt(jnp.sum(x * x, axis=0, keepdims=True))       # (1, TS)
        x = x * pl.reciprocal(1.0 + nrm, approx=True)               # EUP
        o_ref[b] = (((x + 1.0).astype(ew_dtype))
                    * blk.astype(ew_dtype)).astype(o_ref.dtype)


def _lrn_rank_kernel(x_ref, p_ref, q_ref, o_ref, *, ew_dtype):
    """'lrn' for C above the fold threshold: down-projection AND the rank-K
    expansion both run on the (otherwise idle) MXU instead of a VPU FMA
    loop."""
    p = p_ref[...]
    q = q_ref[...]
    for b in range(x_ref.shape[0]):
        blk = x_ref[b]
        h = jnp.dot(p, blk, preferred_element_type=jnp.float32)      # (K, TS)
        x = jnp.dot(q, h, preferred_element_type=jnp.float32)        # (C, TS)
        nrm = jnp.sqrt(jnp.sum(x * x, axis=0, keepdims=True))
        x = x * pl.reciprocal(1.0 + nrm, approx=True)
        o_ref[b] = (((x + 1.0).astype(ew_dtype))
                    * blk.astype(ew_dtype)).astype(o_ref.dtype)


# ---------------------------------------------------------------------------
# pallas_call plumbing
# ---------------------------------------------------------------------------
def _pick_tiles(N, C, S, itemsize, target_bytes):
    # Spatial (lane) tile: multiple of 128 (lane-dense stores) or full extent.
    if S <= 128:
        ts = S
    else:
        ts = target_bytes // max(1, C * itemsize)
        ts = max(128, min(ts, _MAX_TILE_LANES))
        ts = (ts // 128) * 128
        if ts >= S:
            ts = S
    # Batch tile: for small feature maps a single (C, ts) slab is far below
    # the target block size, so pack several batch elements per grid step to
    # amortize the ~0.35us fixed per-step cost.  Keep >= 2 grid steps when
    # N > 1 so megacore sharding stays viable.
    slab = C * ts * itemsize
    nb = 1
    if N > 1 and slab < target_bytes:
        nb = min(N, max(1, target_bytes // max(1, slab)),
                 _MAX_BATCH_TILE, max(1, N // 2))
    return nb, ts


def _saw_pallas_call(kernel, x_ncs, weights, *, flops, transcendentals):
    cfg = _hw_config()
    N, C, S = x_ncs.shape
    nb, ts = _pick_tiles(N, C, S, x_ncs.dtype.itemsize,
                         cfg["target_block_bytes"])
    grid = (pl.cdiv(N, nb), pl.cdiv(S, ts))
    # Ragged tail blocks (batch or lanes) are safe: every output element
    # depends only on its own batch slab / lane (the matmul contracts over
    # channels only), so padded garbage never leaks into valid outputs and
    # Pallas masks the out-of-bounds writes.
    data_spec = pl.BlockSpec((nb, C, ts), lambda n, s: (n, 0, s))
    w_specs = []
    for w in weights:
        kwargs = {}
        if int(w.size) * w.dtype.itemsize >= _SINGLE_BUF_WEIGHT_BYTES:
            # The weight's block index is constant across the grid -> a second
            # (double) buffer is pure VMEM waste; single-buffer big weights.
            kwargs["pipeline_mode"] = pl.Buffered(1)
        w_specs.append(
            pl.BlockSpec(w.shape, (lambda n, s, nd=w.ndim: (0,) * nd), **kwargs))
    bytes_accessed = (2 * int(x_ncs.size) * x_ncs.dtype.itemsize
                      + sum(int(w.size) * w.dtype.itemsize for w in weights))
    return pl.pallas_call(
        kernel,
        out_shape=jax.ShapeDtypeStruct((N, C, S), x_ncs.dtype),
        grid=grid,
        in_specs=[data_spec] + w_specs,
        out_specs=pl.BlockSpec((nb, C, ts), lambda n, s: (n, 0, s)),
        compiler_params=pltpu.CompilerParams(
            dimension_semantics=("parallel", "parallel"),
            vmem_limit_bytes=cfg["vmem_limit_bytes"]),
        cost_estimate=pl.CostEstimate(
            flops=int(flops), transcendentals=int(transcendentals),
            bytes_accessed=int(bytes_accessed)),
    )(x_ncs, *weights)


# ---------------------------------------------------------------------------
# Module wrapper (parameter setup + layout plumbing; no transposes, no pad)
# ---------------------------------------------------------------------------
class SAWLayerPallas:
    def __init__(self, out_features, saw_method, saw_k, key,
                 force_large_c_path=False):
        self.out_features = out_features
        self.saw_method = saw_method
        self.saw_k = saw_k
        # Testing hook: force the above-threshold kernels (shift-roll /
        # rank-K lrn) at small C so those paths are exercised.
        self.force_large_c_path = force_large_c_path
        if saw_method == "roll" and saw_k > 0:
            # torch: K Parameters of shape (C,), zero-init (exact identity);
            # small random values here so the compute path is exercised.
            self.thetas = 0.05 * jax.random.normal(
                key, (saw_k, out_features), jnp.float32)
        elif saw_method == "lrn" and saw_k > 0:
            kp, kq = jax.random.split(key)
            # nn.Linear(C, k).weight: (k, C), kaiming_uniform(a=sqrt(5))
            gain = math.sqrt(2.0 / (1.0 + 5.0))
            bound = gain * math.sqrt(3.0 / out_features)
            self.P = jax.random.uniform(kp, (saw_k, out_features),
                                        jnp.float32, -bound, bound)
            # nn.Linear(k, C).weight: (C, k), zero-init in torch; random here.
            self.Q = 0.1 * jax.random.normal(kq, (out_features, saw_k),
                                             jnp.float32)

    def _roll_matrix(self):
        """Fold K channel rolls + thetas into one (C, C) matrix A with
        A[c, (c - i - 1) % C] += theta_i[c]  so that  x = 1 + A @ blk."""
        C = self.out_features
        A = jnp.zeros((C, C), jnp.float32)
        dst = jnp.arange(C)
        for i in range(self.saw_k):
            src = (dst - (i + 1)) % C
            A = A.at[dst, src].add(self.thetas[i])
        return A

    def __call__(self, x_nchw):
        if self.saw_k <= 0 or self.saw_method not in ("roll", "lrn"):
            return x_nchw
        cfg = _hw_config()
        N, C, H, W = x_nchw.shape
        assert C == self.out_features
        S = H * W
        x = x_nchw.reshape(N, C, S)     # free reshape; no NCHW<->NHWC transpose
        K = self.saw_k
        is_bf16 = x.dtype == jnp.bfloat16
        # bf16 elementwise epilogue on bf16-VALU chips (v6e/v7x); f32 on v5e.
        ew_dtype = jnp.bfloat16 if (is_bf16 and not cfg["is_v5e"]) else jnp.float32
        # bf16 inputs double the HBM element rate -> the ~2C-FLOP/elem dense
        # fold hits the MXU roofline at half the channel count.
        fold_max_c = cfg["roll_fold_max_c"] // (2 if is_bf16 else 1)

        if self.saw_method == "roll":
            use_fold = (C <= fold_max_c) or (C % 8 != 0)
            if self.force_large_c_path and C % 8 == 0:
                use_fold = False
            if use_fold:
                kern = functools.partial(_roll_fold_kernel, ew_dtype=ew_dtype)
                weights = [self._roll_matrix().astype(jnp.bfloat16)]
                flops = 2 * N * S * C * C + 3 * N * S * C
            else:
                # Large C: dense fold would be MXU-roofline-bound and its
                # weight too big; use XLU rolls + VPU FMAs instead.  Roll
                # direction verified once at runtime and corrected if needed.
                sign = 1 if _pltpu_roll_matches_jnp_roll() else -1
                shifts = tuple((sign * (i + 1)) % C for i in range(K))
                kern = functools.partial(_roll_shift_kernel, shifts=shifts)
                weights = [jnp.transpose(self.thetas)]           # (C, K) f32
                flops = N * S * C * (2 * K + 2)
            trans = 0
        else:  # 'lrn'
            use_fold = (C <= fold_max_c) and not self.force_large_c_path
            if use_fold:
                # Fold the rank-K bottleneck: W = Q @ P, one MXU matmul/slab.
                Wm = jnp.dot(self.Q, self.P,
                             precision=jax.lax.Precision.HIGHEST)
                kern = functools.partial(_lrn_fold_kernel, ew_dtype=ew_dtype)
                weights = [Wm.astype(jnp.bfloat16)]
                flops = 2 * N * S * C * C + 6 * N * S * C
            else:
                kern = functools.partial(_lrn_rank_kernel, ew_dtype=ew_dtype)
                weights = [self.P.astype(jnp.bfloat16),
                           self.Q.astype(jnp.bfloat16)]
                flops = 4 * N * S * C * K + 6 * N * S * C
            trans = 2 * N * S           # sqrt + reciprocal per position
        out = _saw_pallas_call(kern, x, weights, flops=flops,
                               transcendentals=trans)
        return out.reshape(N, C, H, W)


# ---------------------------------------------------------------------------
# Pure-JAX reference mirroring the PyTorch forward exactly (for validation)
# ---------------------------------------------------------------------------
def saw_reference(x_nchw, layer):
    if layer.saw_k <= 0 or layer.saw_method not in ("roll", "lrn"):
        return x_nchw
    xf = x_nchw.astype(jnp.float32)
    if layer.saw_method == "roll":
        acc = jnp.ones_like(xf)
        for i in range(layer.saw_k):
            theta = layer.thetas[i].reshape(1, -1, 1, 1)
            acc = acc + theta * jnp.roll(xf, i + 1, axis=1)
        return acc * xf
    # 'lrn'
    N, C, H, W = xf.shape
    rows = jnp.transpose(xf, (0, 2, 3, 1)).reshape(-1, C)
    h = jnp.matmul(rows, layer.P.T, precision=jax.lax.Precision.HIGHEST)
    x = jnp.matmul(h, layer.Q.T, precision=jax.lax.Precision.HIGHEST)
    x = x / (1.0 + jnp.linalg.norm(x, axis=-1, keepdims=True))
    out = (x + 1.0) * rows
    return jnp.transpose(out.reshape(N, H, W, C), (0, 3, 1, 2))


if __name__ == "__main__":
    key = jax.random.PRNGKey(0)
    kx1, kx2, kx3, kx4, kroll, klrn = jax.random.split(key, 6)

    # (shape, dtype, data key, force_large_c_path, tolerance)
    cases = [
        # H*W = 256: lane-dense stores, folded MXU paths.
        ((2, 32, 16, 16), jnp.float32, kx1, False, 3e-2),
        # H*W = 64 < 128: full-extent (masked-lane) blocks.
        ((2, 64, 8, 8), jnp.float32, kx2, False, 3e-2),
        # Tiny feature map, N=8: batch-tiled blocks (NB > 1 per grid step).
        ((8, 32, 4, 4), jnp.float32, kx3, False, 3e-2),
        # Force the large-C kernels (pltpu.roll shift path, rank-K MXU lrn)
        # so they are exercised and validated even at small C.
        ((2, 64, 16, 16), jnp.float32, kx4, True, 3e-2),
        # bf16 activations: native-dtype matmul operand + bf16 epilogue.
        ((2, 32, 16, 16), jnp.bfloat16, kx1, False, 8e-2),
    ]

    for shape, dtype, kx, force, tol in cases:
        _, C, _, _ = shape
        x = jax.random.normal(kx, shape, jnp.float32).astype(dtype)
        for method, pkey in (("roll", kroll), ("lrn", klrn)):
            layer = SAWLayerPallas(out_features=C, saw_method=method,
                                   saw_k=SAW_K, key=pkey,
                                   force_large_c_path=force)
            out = jax.block_until_ready(layer(x))
            ref = jax.block_until_ready(saw_reference(x, layer))
            assert out.shape == x.shape and out.dtype == x.dtype
            # Kernel uses bf16 weights, the MXU's native bf16-multiply /
            # f32-accumulate default and an approximate EUP reciprocal; the
            # reference is exact f32, hence the tolerance (wider for bf16
            # activations/outputs).
            np.testing.assert_allclose(
                np.asarray(out.astype(jnp.float32)),
                np.asarray(ref),
                rtol=tol, atol=tol)

    print("KERNEL_OK")
</pallas_src>

<mosaic_0001>
module attributes {stable_mosaic.version = 11 : i64} {
  func.func @_roll_fold_kernel(%arg0: i32, %arg1: i32, %arg2: memref<1x32x256xf32, #tpu.memory_space<vmem>>, %arg3: memref<32x32xbf16, #tpu.memory_space<vmem>>, %arg4: memref<1x32x256xf32, #tpu.memory_space<vmem>>) attributes {dimension_semantics = [#tpu.dimension_semantics<parallel>, #tpu.dimension_semantics<parallel>], iteration_bounds = array<i64: 2, 1>, scalar_prefetch = 0 : i64, scratch_operands = 0 : i64, tpu.core_type = #tpu.core_type<tc>, window_params = [{transform_indices = @transform_0, window_bounds = array<i64: 1, 32, 256>}, {pipeline_mode = #tpu.pipeline_mode<synchronous>, transform_indices = @transform_1, window_bounds = array<i64: 32, 32>}, {transform_indices = @transform_2, window_bounds = array<i64: 1, 32, 256>}]} {
    %c0 = arith.constant 0 : index
    %c0_0 = arith.constant 0 : index
    %0 = vector.load %arg3[%c0, %c0_0] : memref<32x32xbf16, #tpu.memory_space<vmem>>, vector<32x32xbf16>
    %c0_1 = arith.constant 0 : index
    %c0_2 = arith.constant 0 : index
    %c0_3 = arith.constant 0 : index
    %1 = vector.load %arg2[%c0_1, %c0_2, %c0_3] : memref<1x32x256xf32, #tpu.memory_space<vmem>>, vector<1x32x256xf32>
    %2 = vector.shape_cast %1 : vector<1x32x256xf32> to vector<32x256xf32>
    %cst = arith.constant dense<0.000000e+00> : vector<32x256xf32>
    %3 = tpu.matmul %0, %2, %cst {dimension_numbers = #tpu.dot_dimension_numbers<[1], [0], [0], [1], [0, 0, 1, 1], [], []>} : vector<32x32xbf16>, vector<32x256xf32>, vector<32x256xf32> -> vector<32x256xf32>
    %cst_4 = arith.constant 1.000000e+00 : f32
    %4 = vector.broadcast %cst_4 : f32 to vector<32x256xf32>
    %5 = arith.addf %4, %3 : vector<32x256xf32>
    %6 = arith.mulf %5, %2 : vector<32x256xf32>
    %c0_5 = arith.constant 0 : index
    %c0_6 = arith.constant 0 : index
    %c0_7 = arith.constant 0 : index
    %7 = vector.load %arg4[%c0_5, %c0_6, %c0_7] : memref<1x32x256xf32, #tpu.memory_space<vmem>>, vector<1x32x256xf32>
    %8 = vector.shape_cast %7 : vector<1x32x256xf32> to vector<32x256xf32>
    %9 = vector.shape_cast %6 : vector<32x256xf32> to vector<1x32x256xf32>
    tpu.vector_store %arg4[%c0_5, %c0_6, %c0_7], %9 {strides = array<i32>} : memref<1x32x256xf32, #tpu.memory_space<vmem>>, vector<1x32x256xf32>,
    return
  }
  func.func @transform_0(%arg0: i32, %arg1: i32) -> (i32, i32, i32) {
    %c0_i32 = arith.constant 0 : i32
    %c0_i32_0 = arith.constant 0 : i32
    return %arg0, %c0_i32, %arg1 : i32, i32, i32
  }
  func.func @transform_1(%arg0: i32, %arg1: i32) -> (i32, i32) {
    %c0_i32 = arith.constant 0 : i32
    %c0_i32_0 = arith.constant 0 : i32
    %c0_i32_1 = arith.constant 0 : i32
    return %c0_i32, %c0_i32_0 : i32, i32
  }
  func.func @transform_2(%arg0: i32, %arg1: i32) -> (i32, i32, i32) {
    %c0_i32 = arith.constant 0 : i32
    %c0_i32_0 = arith.constant 0 : i32
    return %arg0, %c0_i32, %arg1 : i32, i32, i32
  }
}

</mosaic_0001>

<llo_original>
// kernel: tpu_custom_call.1
$region0: #{tpu_custom_call.1}
  #allocation0 [shape = 'u32[]', space=smem, size = 0x4, offset = 0x4, fixed_abs, tag = 'smem constant byte address 0x4 - core index']
  #allocation1 [shape = 'u32[144,128]{1,0:T(1,128)}', space=vmem, size = 0x12000, scoped, tag = 'internal scratch']
  %s0 = inlined_call_operand.hbm [shape: f32[2,32,256], index: 0, kind: input, shape index: {}]
  %s1 = inlined_call_operand.hbm [shape: bf16[32,32], index: 1, kind: input, shape index: {}]
  %s2 = inlined_call_operand.hbm [shape: f32[2,32,256], index: 2, kind: output, shape index: {}]
  %s3 = sld [smem:[#allocation0]]
  $region49: #{tpu_custom_call.1} parent=0
    _
  %s5 = ssub.s32 1, %s3
  %s6 = scalar_select 0, %s5, %s3
  $region1: #{tpu_custom_call.1} parent=0
    #allocation2 [shape = 'u8[65536]{0}', space=vmem, size = 0x10000, scoped, tag = 'input window, operand 0']
    #allocation3 [shape = 's32[2]{0}', space=sflag, size = 0x8, scoped, tag = 'scoped memory for tpu_custom_call.1']
    #allocation4 [shape = 's32[2]{0}', space=sflag, size = 0x8, scoped, tag = 'scoped memory for tpu_custom_call.1']
    #allocation5 [shape = 'u8[8192]{0}', space=vmem, size = 0x2000, scoped, tag = 'input window, operand 1, single buffered']
    #allocation6 [shape = 's32[1]{0}', space=sflag, size = 0x4, scoped, tag = 'scoped memory for tpu_custom_call.1']
    #allocation7 [shape = 'u8[65536]{0}', space=vmem, size = 0x10000, scoped, tag = 'output window, operand 0']
    %7 = vsyncpa [#allocation3], 0
    %s8 = scalar_lea.sflag [#allocation3], 1
    %9 = vsyncpa %s8, 0
    %10 = vsyncpa [#allocation6], 0
    %11 = vsyncpa [#allocation4], 0
    %s12 = scalar_lea.sflag [#allocation4], 1
    %13 = vsyncpa %s12, 0
    loop: start=0, step=1, limit=4
    $region2: #{tpu_custom_call.1} parent=1 // loop_pre_header
      _
    $region3: #{tpu_custom_call.1} parent=1 // loop_header
      %s15 = sphi 0, %s19
      %p16 = scmp.ge.s32.totalorder %s15, 4
      %s22 = sphi 0, %s34
      %s23 = sphi 0, %s30
      %s24 = sphi 0, %s22
      %s25 = sphi 0, %s23
      %s26 = sphi 0, %s24
      %s27 = sphi 0, %s25
      %s39 = sphi 0, %s41
      %s42 = sphi 0, %s39
      %s43 = sphi 0, %s42
      %s59 = sphi 0, %s43
      %s63 = sphi 0, %s63
      %s65 = sphi 0, %s63
      %s66 = sphi 0, %s65
      %s80 = sphi 0, %s66
      %s88 = sphi 0, %s90
      %s91 = sphi 0, %s88
      %s92 = sphi 0, %s91
      %s108 = sphi 0, %s92
    $region4: #{tpu_custom_call.1} parent=1 // loop_header_branch
      %18 = sbr.rel (%p16) target = $region8
    $region5: #{tpu_custom_call.1} parent=1 // loop_body
      %s20 = ssub.s32 %s15, 1
      %s21 = ssub.s32 %s15, 2
      %s28 = sadd.s32 1, %s23
      %p29 = scmp.ge.s32.totalorder %s28, 1
      %s30 = scalar_select %p29, 0, %s28
      %s31 = sadd.s32 1, %s22
      %s32 = scalar_select %p29, %s31, %s22
      %p33 = scmp.ge.s32.totalorder %s32, 2
      %s34 = scalar_select %p33, 0, %s32
      %s35 = ssub.s32 %s22, %s34
      %s36 = ssub.s32 %s23, %s30
      %s37 = sor.u32 %s35, %s36
      %p38 = scmp.eq.s32.totalorder %s37, 0
      %s40 = sadd.s32 %s39, 1
      %s41 = scalar_select %p38, %s39, %s40
      %p44 = pneg %p38
      %p45 = scmp.eq.s32.totalorder %s15, 1
      %p46 = por %p44, %p45
      %p47 = scmp.ne.s32.totalorder %s39, %s42
      %p48 = scmp.eq.s32.totalorder %s15, 0
      %p49 = por %p47, %p48
      %p50 = scmp.ne.s32.totalorder %s39, %s42
      %p51 = scmp.eq.s32.totalorder %s20, 1
      %p52 = por %p50, %p51
      %p53 = scmp.ne.s32.totalorder %s42, %s43
      %p54 = scmp.eq.s32.totalorder %s20, 0
      %p55 = por %p53, %p54
      %p56 = scmp.ne.s32.totalorder %s42, %s43
      %p57 = scmp.eq.s32.totalorder %s21, 1
      %p58 = por %p56, %p57
      %p60 = scmp.ne.s32.totalorder %s43, %s59
      %p61 = scmp.eq.s32.totalorder %s21, 0
      %p62 = por %p60, %p61
      %s64 = sadd.s32 %s63, 1
      %p67 = scmp.eq.s32.totalorder %s15, 1
      %p68 = scmp.ne.s32.totalorder %s63, %s65
      %p69 = scmp.eq.s32.totalorder %s15, 0
      %p70 = por %p68, %p69
      %p71 = scmp.ne.s32.totalorder %s63, %s65
      %p72 = scmp.eq.s32.totalorder %s20, 1
      %p73 = por %p71, %p72
      %p74 = scmp.ne.s32.totalorder %s65, %s66
      %p75 = scmp.eq.s32.totalorder %s20, 0
      %p76 = por %p74, %p75
      %p77 = scmp.ne.s32.totalorder %s65, %s66
      %p78 = scmp.eq.s32.totalorder %s21, 1
      %p79 = por %p77, %p78
      %p81 = scmp.ne.s32.totalorder %s66, %s80
      %p82 = scmp.eq.s32.totalorder %s21, 0
      %p83 = por %p81, %p82
      %s84 = ssub.s32 %s22, %s34
      %s85 = ssub.s32 %s23, %s30
      %s86 = sor.u32 %s84, %s85
      %p87 = scmp.eq.s32.totalorder %s86, 0
      %s89 = sadd.s32 %s88, 1
      %s90 = scalar_select %p87, %s88, %s89
      %p93 = pneg %p87
      %p94 = scmp.eq.s32.totalorder %s15, 1
      %p95 = por %p93, %p94
      %p96 = scmp.ne.s32.totalorder %s88, %s91
      %p97 = scmp.eq.s32.totalorder %s15, 0
      %p98 = por %p96, %p97
      %p99 = scmp.ne.s32.totalorder %s88, %s91
      %p100 = scmp.eq.s32.totalorder %s20, 1
      %p101 = por %p99, %p100
      %p102 = scmp.ne.s32.totalorder %s91, %s92
      %p103 = scmp.eq.s32.totalorder %s20, 0
      %p104 = por %p102, %p103
      %p105 = scmp.ne.s32.totalorder %s91, %s92
      %p106 = scmp.eq.s32.totalorder %s21, 1
      %p107 = por %p105, %p106
      %p109 = scmp.ne.s32.totalorder %s92, %s108
      %p110 = scmp.eq.s32.totalorder %s21, 0
      %p111 = por %p109, %p110
      %p112 = scmp.le.s32.totalorder 1, %s15
      %p113 = scmp.lt.s32.totalorder %s15, 3
      %p114 = pnand %p112, %p113
      %p115 = pneg %p114
      // Predicated region
      $region9: #{tpu_custom_call.1} parent=5 // pred_check
        _
      $region10: #{tpu_custom_call.1} parent=5 // pred_check_branch
        %117 = sbr.rel (%p114) target = $region12
      $region11: #{tpu_custom_call.1} parent=5 // pred_region
        %s118 = ssub.s32 %s15, 1
        // Predicated region
        $region13: #{tpu_custom_call.1} parent=11 // pred_check
          %p119 = pneg %p76
        $region14: #{tpu_custom_call.1} parent=11 // pred_check_branch
          %121 = sbr.rel (%p119) target = $region16
        $region15: #{tpu_custom_call.1} parent=11 // pred_region
          %s123 = ssub.s32 256, 256
          %124 = vsyncadd [#allocation6], %s123
          %s125 = sshll.u32 [#allocation5], 4
          %s126 = int_to_ptr.vmem [resolvable:$true] %s125
          %131 = dma.hbm_to_vmem [thread:$0]  %s1, 256, %s126, [#allocation6], 64, 64, 4
        $region16: #{tpu_custom_call.1} parent=11 // pred_fallthru
          _
      $region12: #{tpu_custom_call.1} parent=5 // pred_fallthru
        _
      %p132 = scmp.lt.s32.totalorder %s15, 2
      // Predicated region
      $region17: #{tpu_custom_call.1} parent=5 // pred_check
        %p133 = pneg %p132
      $region18: #{tpu_custom_call.1} parent=5 // pred_check_branch
        %135 = sbr.rel (%p133) target = $region20
      $region19: #{tpu_custom_call.1} parent=5 // pred_region
        // Predicated region
        $region21: #{tpu_custom_call.1} parent=19 // pred_check
          %p136 = pneg %p49
        $region22: #{tpu_custom_call.1} parent=19 // pred_check_branch
          %138 = sbr.rel (%p136) target = $region24
        $region23: #{tpu_custom_call.1} parent=19 // pred_region
          %s139 = sand.u32 %s39, 1
          %s140 = scalar_lea.sflag [#allocation3], %s139
          %s141 = sand.u32 %s39, 1
          %s142 = smul.addr %s141, 64
          %s143 = scalar_lea.vmem [#allocation2], %s142
          %s144 = smul.u32 2, %s23
          %s146 = ssub.s32 1024, 1024
          %147 = vsyncadd %s140, %s146
          %s148 = smul.addr %s22, 8
          %s149 = sadd.s32 %s144, %s148
          %s150 = smul.addr %s149, 128
          %s151 = scalar_lea.hbm %s0, %s150
          %s152 = sshll.u32 %s143, 4
          %s153 = int_to_ptr.vmem [resolvable:$true] %s152
          %158 = dma.hbm_to_vmem [thread:$0]  %s151, 1024, %s153, %s140, 256, 256, 16
        $region24: #{tpu_custom_call.1} parent=19 // pred_fallthru
          _
      $region20: #{tpu_custom_call.1} parent=5 // pred_fallthru
        _
      %p159 = scmp.le.s32.totalorder 1, %s15
      %p160 = scmp.lt.s32.totalorder %s15, 3
      %p161 = pnand %p159, %p160
      %p162 = pneg %p161
      // Predicated region
      $region25: #{tpu_custom_call.1} parent=5 // pred_check
        _
      $region26: #{tpu_custom_call.1} parent=5 // pred_check_branch
        %164 = sbr.rel (%p161) target = $region28
      $region27: #{tpu_custom_call.1} parent=5 // pred_region
        %s165 = ssub.s32 %s15, 1
        %s166 = sand.u32 %s42, 1
        %s167 = scalar_lea.sflag [#allocation3], %s166
        %s168 = sand.u32 %s42, 1
        %s169 = smul.addr %s168, 64
        %s170 = scalar_lea.vmem [#allocation2], %s169
        // Predicated region
        $region29: #{tpu_custom_call.1} parent=27 // pred_check
          %p171 = pneg %p55
        $region30: #{tpu_custom_call.1} parent=27 // pred_check_branch
          %173 = sbr.rel (%p171) target = $region32
        $region31: #{tpu_custom_call.1} parent=27 // pred_region
          %174 = dma.done %s167, 1024
        $region32: #{tpu_custom_call.1} parent=27 // pred_fallthru
          _
        // Predicated region
        $region33: #{tpu_custom_call.1} parent=27 // pred_check
          %p175 = pneg %p76
        $region34: #{tpu_custom_call.1} parent=27 // pred_check_branch
          %177 = sbr.rel (%p175) target = $region36
        $region35: #{tpu_custom_call.1} parent=27 // pred_region
          %178 = dma.done [#allocation6], 256
        $region36: #{tpu_custom_call.1} parent=27 // pred_fallthru
          _
        %s179 = sand.u32 %s42, 1
        %s180 = scalar_lea.sflag [#allocation3], %s179
        %s181 = sand.u32 %s42, 1
        %s182 = smul.addr %s181, 64
        %s183 = scalar_lea.vmem [#allocation2], %s182
        %p184 = pneg %p55
        %p185 = pneg %p52
        %p186 = pneg %p76
        %p187 = pneg %p73
        %p188 = pneg %p104
        %p189 = pneg %p101
        %s190 = sand.u32 %s91, 1
        %s191 = scalar_lea.sflag [#allocation4], %s190
        %s192 = sand.u32 %s91, 1
        %s193 = smul.addr %s192, 64
        %s194 = scalar_lea.vmem [#allocation7], %s193
        %s195 = smul.u32 2, %s25
        %s196 = smul.u32 2, %s25
        %v198 = vld [vmem:[#allocation5] sm:$0xf]
        %v199 = vld [vmem:[#allocation5 + $0x4] sm:$0xf]
        %v200 = vld [vmem:[#allocation5 + $0x8] sm:$0xf]
        %v201 = vld [vmem:[#allocation5 + $0xc] sm:$0xf]
        %v202 = vld [vmem:[%s170] sm:$0xff]
        %v203 = vld [vmem:[%s170 + $0x8] sm:$0xff]
        %v204 = vld [vmem:[%s170 + $0x10] sm:$0xff]
        %v205 = vld [vmem:[%s170 + $0x18] sm:$0xff]
        %v206 = vld [vmem:[%s170 + $0x20] sm:$0xff]
        %v207 = vld [vmem:[%s170 + $0x28] sm:$0xff]
        %v208 = vld [vmem:[%s170 + $0x30] sm:$0xff]
        %v209 = vld [vmem:[%s170 + $0x38] sm:$0xff]
        %v214 = vunpack.c.l.b16 %v198
        %v215 = vunpack.c.l.b16 %v199
        %v216 = vunpack.c.l.b16 %v200
        %v217 = vunpack.c.l.b16 %v201
        %v218 = vpack.c.b16 %v215, %v214
        %v219 = vpack.c.b16 %v217, %v216
        %vm220 = vcmask 261120
        %v222 = vsel %vm220, %v218, 0
        %v225 = vsel %vm220, %v219, 0
        %227 = vmatprep.subr.mxu0 0.0
        %228 = vmatpush1.msra.mxu0 0.0
        %229 = vmatprep.subr.mxu0 0.0
        %230 = vmatpush1.msra.mxu0 0.0
        %231 = vmatprep.subr.mxu0 0.0
        %232 = vmatpush1.msra.mxu0 0.0
        %233 = vmatprep.subr.mxu0 0.0
        %234 = vmatpush1.msra.mxu0 0.0
        %235 = vmatprep.subr.mxu0 0.0
        %236 = vmatpush1.msra.mxu0 0.0
        %237 = vmatprep.subr.mxu0 0.0
        %238 = vmatpush1.msra.mxu0 0.0
        %239 = vmatprep.subr.mxu0 0.0
        %240 = vmatpush1.msra.mxu0 0.0
        %241 = vmatprep.subr.mxu0 0.0
        %242 = vmatpush1.msra.mxu0 0.0
        %243 = vmatprep.subr.mxu0 0.0
        %244 = vmatpush1.msra.mxu0 0.0
        %245 = vmatprep.subr.mxu0 0.0
        %246 = vmatpush1.msra.mxu0 0.0
        %247 = vmatprep.subr.mxu0 0.0
        %248 = vmatpush1.msra.mxu0 0.0
        %249 = vmatprep.subr.mxu0 0.0
        %250 = vmatpush1.msra.mxu0 0.0
        %251 = vmatprep.subr.mxu0 %v209
        %252 = vmatpush1.msra.mxu0 %v208
        %253 = vmatprep.subr.mxu0 %v207
        %254 = vmatpush1.msra.mxu0 %v206
        %255 = vmatprep.subr.mxu0 %v205
        %256 = vmatpush1.msra.mxu0 %v204
        %257 = vmatprep.subr.mxu0 %v203
        %258 = vmatpush1.msra.mxu0 %v202
        %259 = vmatprep.subr.mxu0 0.0
        %260 = vmatpush2.msra.mxu0 0.0
        %261 = vmatprep.subr.mxu0 0.0
        %262 = vmatpush2.msra.mxu0 0.0
        %263 = vmatprep.subr.mxu0 0.0
        %264 = vmatpush2.msra.mxu0 0.0
        %265 = vmatprep.subr.mxu0 0.0
        %266 = vmatpush2.msra.mxu0 0.0
        %267 = vmatprep.subr.mxu0 0.0
        %268 = vmatpush2.msra.mxu0 0.0
        %269 = vmatprep.subr.mxu0 0.0
        %270 = vmatpush2.msra.mxu0 0.0
        %271 = vmatprep.subr.mxu0 0.0
        %272 = vmatpush2.msra.mxu0 0.0
        %273 = vmatprep.subr.mxu0 0.0
        %274 = vmatpush2.msra.mxu0 0.0
        %275 = vmatprep.subr.mxu0 0.0
        %276 = vmatpush2.msra.mxu0 0.0
        %277 = vmatprep.subr.mxu0 0.0
        %278 = vmatpush2.msra.mxu0 0.0
        %279 = vmatprep.subr.mxu0 0.0
        %280 = vmatpush2.msra.mxu0 0.0
        %281 = vmatprep.subr.mxu0 0.0
        %282 = vmatpush2.msra.mxu0 0.0
        %283 = vmatprep.subr.mxu0 0.0
        %284 = vmatpush2.msra.mxu0 0.0
        %285 = vmatprep.subr.mxu0 0.0
        %286 = vmatpush2.msra.mxu0 0.0
        %287 = vmatprep.subr.mxu0 0.0
        %288 = vmatpush2.msra.mxu0 0.0
        %289 = vmatprep.subr.mxu0 0.0
        %290 = vmatpush2.msra.mxu0 0.0
        %291 = vmatprep.mubr.bf16.mxu0 0
        %292 = vmatmul.mubr.bf16.gmra.mxu0 %v222
        %v293 = vpop.f32.mrf.mxu0
        %v294 = vadd.f32 1.0, %v293
        %v295 = vpop.f32.mrf.mxu0
        %v296 = vadd.f32 1.0, %v295
        %v297 = vpop.f32.mrf.mxu0
        %v298 = vadd.f32 1.0, %v297
        %v299 = vpop.f32.mrf.mxu0
        %v300 = vadd.f32 1.0, %v299
        %301 = vmatprep.mubr.bf16.mxu0 0
        %302 = vmatmul.mubr.bf16.gmra.mxu0 %v225
        %v303 = vpop.f32.mrf.mxu0
        %v304 = vadd.f32 1.0, %v303
        %v305 = vpop.f32.mrf.mxu0
        %v306 = vadd.f32 1.0, %v305
        %v307 = vpop.f32.mrf.mxu0
        %v308 = vadd.f32 1.0, %v307
        %v309 = vpop.f32.mrf.mxu0
        %v310 = vadd.f32 1.0, %v309
        %311 = vdwg.mxu0
        %v312 = vmul.f32 %v294, %v202
        %v313 = vmul.f32 %v296, %v203
        %v314 = vmul.f32 %v298, %v204
        %v315 = vmul.f32 %v300, %v205
        %v316 = vmul.f32 %v304, %v206
        %v317 = vmul.f32 %v306, %v207
        %v318 = vmul.f32 %v308, %v208
        %v319 = vmul.f32 %v310, %v209
        %320 = vst [vmem:[%s194] sm:$0xff] %v312
        %321 = vst [vmem:[%s194 + $0x8] sm:$0xff] %v313
        %322 = vst [vmem:[%s194 + $0x10] sm:$0xff] %v314
        %323 = vst [vmem:[%s194 + $0x18] sm:$0xff] %v315
        %324 = vst [vmem:[%s194 + $0x20] sm:$0xff] %v316
        %325 = vst [vmem:[%s194 + $0x28] sm:$0xff] %v317
        %326 = vst [vmem:[%s194 + $0x30] sm:$0xff] %v318
        %327 = vst [vmem:[%s194 + $0x38] sm:$0xff] %v319
        %s328 = sand.u32 %s91, 1
        %s329 = scalar_lea.sflag [#allocation4], %s328
        %s330 = sand.u32 %s91, 1
        %s331 = smul.addr %s330, 64
        %s332 = scalar_lea.vmem [#allocation7], %s331
        // Predicated region
        $region37: #{tpu_custom_call.1} parent=27 // pred_check
          %p333 = pneg %p101
        $region38: #{tpu_custom_call.1} parent=27 // pred_check_branch
          %335 = sbr.rel (%p333) target = $region40
        $region39: #{tpu_custom_call.1} parent=27 // pred_region
          %s336 = smul.u32 2, %s25
          %s338 = ssub.s32 1024, 1024
          %339 = vsyncadd %s329, %s338
          %s340 = smul.addr %s24, 8
          %s341 = sadd.s32 %s336, %s340
          %s342 = smul.addr %s341, 128
          %s343 = scalar_lea.hbm %s2, %s342
          %s344 = sshll.u32 %s332, 4
          %s345 = int_to_ptr.vmem [resolvable:$true] %s344
          %350 = dma.vmem_to_hbm [thread:$0]  %s345, 1024, %s343, %s329, 256, 256, 16
        $region40: #{tpu_custom_call.1} parent=27 // pred_fallthru
          _
      $region28: #{tpu_custom_call.1} parent=5 // pred_fallthru
        _
      %p351 = scmp.le.s32.totalorder 2, %s15
      // Predicated region
      $region41: #{tpu_custom_call.1} parent=5 // pred_check
        %p352 = pneg %p351
      $region42: #{tpu_custom_call.1} parent=5 // pred_check_branch
        %354 = sbr.rel (%p352) target = $region44
      $region43: #{tpu_custom_call.1} parent=5 // pred_region
        %s355 = ssub.s32 %s15, 2
        // Predicated region
        $region45: #{tpu_custom_call.1} parent=43 // pred_check
          %p356 = pneg %p107
        $region46: #{tpu_custom_call.1} parent=43 // pred_check_branch
          %358 = sbr.rel (%p356) target = $region48
        $region47: #{tpu_custom_call.1} parent=43 // pred_region
          %s359 = sand.u32 %s92, 1
          %s360 = scalar_lea.sflag [#allocation4], %s359
          %s361 = sand.u32 %s92, 1
          %s362 = smul.addr %s361, 64
          %s363 = scalar_lea.vmem [#allocation7], %s362
          %364 = dma.done %s360, 1024
        $region48: #{tpu_custom_call.1} parent=43 // pred_fallthru
          _
      $region44: #{tpu_custom_call.1} parent=5 // pred_fallthru
        _
    $region6: #{tpu_custom_call.1} parent=1 // loop_footer
      %s19 = sadd.s32 1, %s15
    $region7: #{tpu_custom_call.1} parent=1 // loop_footer_branch
      %14 = sbr.rel target = $region3
    $region8: #{tpu_custom_call.1} parent=1 // loop_exit
      _
    %365 = vsyncpa [#allocation3], 1
    %s366 = scalar_lea.sflag [#allocation3], 1
    %367 = vsyncpa %s366, 1
    %368 = vsyncpa [#allocation6], 1
    %369 = vsyncpa [#allocation4], 1
    %s370 = scalar_lea.sflag [#allocation4], 1
    %371 = vsyncpa %s370, 1

</llo_original>
